<compile_context>
chip_gen: v7x
topology: tpu7x:2x2x1
jax: 0.10.0
libtpu: 0.0.40
codegen_flags: <defaults>
</compile_context>

<pallas_src>
import functools

import jax
import jax.numpy as jnp
from jax.experimental import pallas as pl
from jax.experimental.pallas import tpu as pltpu

_LANE = 128


# ---------------------------------------------------------------------------
# The "operator" (unary elementwise) — computed INSIDE the Pallas kernel.
# ---------------------------------------------------------------------------
def leaky_relu_op(x, *, negative_slope=0.01):
    return jnp.where(x >= 0, x, x * negative_slope)


def _from_another_op_kernel(x_ref, o_ref, *, op_fn):
    xv = x_ref[...]                       # single full-tile load
    o_ref[...] = op_fn(xv + xv).astype(o_ref.dtype)   # torch.add(x, x) fused


# ---------------------------------------------------------------------------
# Generation / layout / tiling helpers
# ---------------------------------------------------------------------------
def _tpu_generation_params():
    """(num_tensorcores, tile_target_bytes). Conservative defaults on failure."""
    num_tc, tile_target = 1, 4 << 20
    try:
        kind = jax.devices()[0].device_kind.lower()
        if "v7" in kind or "7x" in kind:
            num_tc, tile_target = 2, 8 << 20     # 2 TCs, 3.2 TB/s -> bigger tiles
    except Exception:
        pass
    return num_tc, tile_target


def _sublane_multiple(dtype):
    itemsize = jnp.dtype(dtype).itemsize
    if itemsize >= 4:
        return 8
    if itemsize == 2:
        return 16
    return 32


def _choose_layout(total, sub_mult):
    """total is a multiple of 128. Pick lane width W so the slab is [rows, W].

    Prefer the largest W whose row count is sublane-aligned (unmasked stores);
    otherwise the largest W that divides total."""
    for w in (2048, 1024, 512, 256, 128):
        if total % w == 0 and (total // w) % sub_mult == 0:
            return w, total // w
    for w in (2048, 1024, 512, 256, 128):
        if total % w == 0:
            return w, total // w
    return _LANE, total // _LANE          # unreachable when total % 128 == 0


def _choose_block_rows(rows, w, dtype_bytes, tile_target_bytes, num_tc, sub_mult):
    """Pick block_rows: big (~tile_target) sublane-aligned tiles, balanced blocks."""
    row_bytes = w * dtype_bytes
    target_rows = max(sub_mult, tile_target_bytes // row_bytes)
    target_rows = max(sub_mult, (target_rows // sub_mult) * sub_mult)

    if rows <= target_rows:
        # Whole array fits in one tile.
        if num_tc >= 2 and rows >= 2 * sub_mult and rows % (2 * sub_mult) == 0:
            # Balanced 2-way split so both v7x TensorCores stream HBM
            # (skipped on single-TC v5e/v6e — a split there is pure overhead).
            return rows // 2
        return rows                        # block == full dim -> always legal

    # Multi-tile: prefer a sublane-aligned block that divides rows evenly
    # (balanced blocks, no ragged tail), searching a little below the target.
    br = target_rows
    floor = max(sub_mult, (target_rows // 2 // sub_mult) * sub_mult)
    while br >= floor:
        if rows % br == 0:
            return br
        br -= sub_mult
    return target_rows                     # ragged last block handled by cdiv grid


# ---------------------------------------------------------------------------
# Pallas launch on a flat, 128-aligned 1-D array
# ---------------------------------------------------------------------------
def _run_fused_kernel(x_flat, op_fn):
    total = x_flat.size
    dtype = x_flat.dtype
    dtype_bytes = jnp.dtype(dtype).itemsize
    sub_mult = _sublane_multiple(dtype)
    num_tc, tile_target_bytes = _tpu_generation_params()

    w, rows = _choose_layout(total, sub_mult)
    x2d = x_flat.reshape(rows, w)

    block_rows = _choose_block_rows(rows, w, dtype_bytes, tile_target_bytes,
                                    num_tc, sub_mult)
    grid = (pl.cdiv(rows, block_rows),)

    # VMEM budget: double-buffered input + output tiles + compiler headroom.
    tile_bytes = block_rows * w * dtype_bytes
    vmem_limit = min(max(4 * tile_bytes + (2 << 20), 16 << 20), 48 << 20)

    cost = pl.CostEstimate(flops=2 * total, transcendentals=0,
                           bytes_accessed=2 * total * dtype_bytes)

    out2d = pl.pallas_call(
        functools.partial(_from_another_op_kernel, op_fn=op_fn),
        out_shape=jax.ShapeDtypeStruct((rows, w), dtype),
        grid_spec=pltpu.PrefetchScalarGridSpec(
            num_scalar_prefetch=0,
            grid=grid,
            in_specs=[pl.BlockSpec((block_rows, w), lambda i: (i, 0))],
            out_specs=pl.BlockSpec((block_rows, w), lambda i: (i, 0)),
        ),
        compiler_params=pltpu.CompilerParams(
            dimension_semantics=("parallel",),
            vmem_limit_bytes=vmem_limit,
        ),
        cost_estimate=cost,
    )(x2d)
    return out2d.reshape(-1)


# ---------------------------------------------------------------------------
# Public wrapper: op_fn(x + x), any shape / dtype
# ---------------------------------------------------------------------------
def eltwise_unary_from_another_op(x, op_fn):
    orig_shape = x.shape
    orig_dtype = x.dtype
    total = x.size

    if total < _LANE:
        # Tiny edge case: not worth a kernel launch; same math in plain JAX.
        return op_fn(x + x).astype(orig_dtype)

    x_flat = x.reshape(-1)
    aligned = (total // _LANE) * _LANE

    if aligned == total:
        out_flat = _run_fused_kernel(x_flat, op_fn)
    else:
        # 128-aligned prefix through the Pallas kernel; tiny (<128 elem) tail in
        # plain JAX. Avoids the pad+slice HBM round trip and never evaluates
        # op_fn on padding values.
        head_out = _run_fused_kernel(x_flat[:aligned], op_fn)
        tail = x_flat[aligned:]
        tail_out = op_fn(tail + tail).astype(orig_dtype)
        out_flat = jnp.concatenate([head_out, tail_out])

    return out_flat.reshape(orig_shape)


# ---------------------------------------------------------------------------
# ModelFromAnotherOp equivalent
# ---------------------------------------------------------------------------
class ModelFromAnotherOpPallas:
    """JAX/Pallas port of ModelFromAnotherOp: forward(x) = operator(x + x, **kwargs)."""

    def __init__(self, operator, kwargs):
        self.testname = "Element_wise_unary_operators_test_op_src_from_another_op"
        self.operator = operator
        self.kwargs = kwargs

    def __call__(self, x):
        op_fn = functools.partial(self.operator, **self.kwargs)
        return eltwise_unary_from_another_op(x, op_fn)


if __name__ == "__main__":
    # Deterministic small NCHW input, like the PyTorch test harness would feed.
    key = jax.random.PRNGKey(0)
    x = jax.random.normal(key, (2, 4, 16, 16), dtype=jnp.float32)

    model = ModelFromAnotherOpPallas(leaky_relu_op, {"negative_slope": 0.1})
    y = jax.block_until_ready(model(x))

    # Reference: plain JAX with the same formula, outside the kernel.
    xx = x + x
    y_ref = jnp.where(xx >= 0, xx, xx * 0.1)
    assert y.shape == x.shape and y.dtype == x.dtype
    assert bool(jnp.allclose(y, y_ref, atol=1e-6, rtol=1e-6))

    print("KERNEL_OK")
</pallas_src>

<mosaic_0001>
module attributes {stable_mosaic.version = 11 : i64} {
  func.func @_from_another_op_kernel(%arg0: i32, %arg1: memref<8x256xf32, #tpu.memory_space<vmem>>, %arg2: memref<8x256xf32, #tpu.memory_space<vmem>>) attributes {dimension_semantics = [#tpu.dimension_semantics<parallel>], iteration_bounds = array<i64: 1>, scalar_prefetch = 0 : i64, scratch_operands = 0 : i64, tpu.core_type = #tpu.core_type<tc>, window_params = [{transform_indices = @transform_0, window_bounds = array<i64: 8, 256>}, {transform_indices = @transform_1, window_bounds = array<i64: 8, 256>}]} {
    %c0 = arith.constant 0 : index
    %c0_0 = arith.constant 0 : index
    %0 = vector.load %arg1[%c0, %c0_0] : memref<8x256xf32, #tpu.memory_space<vmem>>, vector<8x256xf32>
    %1 = arith.addf %0, %0 : vector<8x256xf32>
    %cst = arith.constant 0.000000e+00 : f32
    %2 = vector.broadcast %cst : f32 to vector<8x256xf32>
    %3 = arith.cmpf oge, %1, %2 : vector<8x256xf32>
    %cst_1 = arith.constant 1.000000e-01 : f32
    %4 = vector.broadcast %cst_1 : f32 to vector<8x256xf32>
    %5 = arith.mulf %1, %4 : vector<8x256xf32>
    %6 = arith.select %3, %1, %5 : vector<8x256xi1>, vector<8x256xf32>
    %c0_2 = arith.constant 0 : index
    %c0_3 = arith.constant 0 : index
    %7 = vector.load %arg2[%c0_2, %c0_3] : memref<8x256xf32, #tpu.memory_space<vmem>>, vector<8x256xf32>
    tpu.vector_store %arg2[%c0_2, %c0_3], %6 {strides = array<i32>} : memref<8x256xf32, #tpu.memory_space<vmem>>, vector<8x256xf32>,
    return
  }
  func.func @transform_0(%arg0: i32) -> (i32, i32) {
    %c0_i32 = arith.constant 0 : i32
    %c0_i32_0 = arith.constant 0 : i32
    return %arg0, %c0_i32 : i32, i32
  }
  func.func @transform_1(%arg0: i32) -> (i32, i32) {
    %c0_i32 = arith.constant 0 : i32
    %c0_i32_0 = arith.constant 0 : i32
    return %arg0, %c0_i32 : i32, i32
  }
}

</mosaic_0001>

<llo_original>
// kernel: tpu_custom_call.1
$region0: #{tpu_custom_call.1}
  #allocation0 [shape = 'u32[]', space=smem, size = 0x4, offset = 0x4, fixed_abs, tag = 'smem constant byte address 0x4 - core index']
  #allocation1 [shape = 'u32[144,128]{1,0:T(1,128)}', space=vmem, size = 0x12000, scoped, tag = 'internal scratch']
  %s0 = inlined_call_operand.hbm [shape: f32[8,256], index: 0, kind: input, shape index: {}]
  %s1 = inlined_call_operand.hbm [shape: f32[8,256], index: 1, kind: output, shape index: {}]
  %s2 = sld [smem:[#allocation0]]
  $region18: #{tpu_custom_call.1} parent=0
    _
  %s4 = ssub.s32 1, %s2
  %s5 = scalar_select 0, %s4, %s2
  $region1: #{tpu_custom_call.1} parent=0
    #allocation2 [shape = 'u8[8192]{0}', space=vmem, size = 0x2000, scoped, tag = 'input window, operand 0, single buffered']
    #allocation3 [shape = 's32[1]{0}', space=sflag, size = 0x4, scoped, tag = 'scoped memory for tpu_custom_call.1']
    #allocation4 [shape = 's32[1]{0}', space=sflag, size = 0x4, scoped, tag = 'scoped memory for tpu_custom_call.1']
    #allocation5 [shape = 'u8[8192]{0}', space=vmem, size = 0x2000, scoped, tag = 'output window, operand 0, single buffered']
    %6 = vsyncpa [#allocation3], 0
    %7 = vsyncpa [#allocation4], 0
    // Predicated region
    $region2: #{tpu_custom_call.1} parent=1 // pred_check
      _
    $region3: #{tpu_custom_call.1} parent=1 // pred_check_branch
      %9 = sbr.rel (0) target = $region5
    $region4: #{tpu_custom_call.1} parent=1 // pred_region
      %s11 = ssub.s32 256, 256
      %12 = vsyncadd [#allocation3], %s11
      %s14 = sshll.u32 [#allocation2], 4
      %s15 = int_to_ptr.vmem [resolvable:$true] %s14
      %17 = dma.hbm_to_vmem [thread:$0]  %s0, 256, %s15, [#allocation3]
    $region5: #{tpu_custom_call.1} parent=1 // pred_fallthru
      _
    // Predicated region
    $region6: #{tpu_custom_call.1} parent=1 // pred_check
      _
    $region7: #{tpu_custom_call.1} parent=1 // pred_check_branch
      %19 = sbr.rel (0) target = $region9
    $region8: #{tpu_custom_call.1} parent=1 // pred_region
      %20 = dma.done [#allocation3], 256
    $region9: #{tpu_custom_call.1} parent=1 // pred_fallthru
      _
    %v21 = vld [vmem:[#allocation2] sm:$0xff]
    %v22 = vld [vmem:[#allocation2 + $0x8] sm:$0xff]
    %v23 = vadd.f32 %v21, %v21
    %v24 = vadd.f32 %v22, %v22
    %vm25 = vcmp.ge.f32.partialorder %v23, 0.0
    %vm26 = vcmp.ge.f32.partialorder %v24, 0.0
    %v27 = vmul.f32 %v23, 0.1
    %v28 = vmul.f32 %v24, 0.1
    %v29 = vsel %vm25, %v23, %v27
    %v30 = vsel %vm26, %v24, %v28
    %31 = vst [vmem:[#allocation5] sm:$0xff] %v29
    %32 = vst [vmem:[#allocation5 + $0x8] sm:$0xff] %v30
    // Predicated region
    $region10: #{tpu_custom_call.1} parent=1 // pred_check
      _
    $region11: #{tpu_custom_call.1} parent=1 // pred_check_branch
      %34 = sbr.rel (0) target = $region13
    $region12: #{tpu_custom_call.1} parent=1 // pred_region
      %s36 = ssub.s32 256, 256
      %37 = vsyncadd [#allocation4], %s36
      %s39 = sshll.u32 [#allocation5], 4
      %s40 = int_to_ptr.vmem [resolvable:$true] %s39
      %42 = dma.vmem_to_hbm [thread:$0]  %s40, 256, %s1, [#allocation4]
    $region13: #{tpu_custom_call.1} parent=1 // pred_fallthru
      _
    // Predicated region
    $region14: #{tpu_custom_call.1} parent=1 // pred_check
      _
    $region15: #{tpu_custom_call.1} parent=1 // pred_check_branch
      %44 = sbr.rel (0) target = $region17
    $region16: #{tpu_custom_call.1} parent=1 // pred_region
      %45 = dma.done [#allocation4], 256
    $region17: #{tpu_custom_call.1} parent=1 // pred_fallthru
      _
    %46 = vsyncpa [#allocation3], 1
    %47 = vsyncpa [#allocation4], 1

</llo_original>
